<compile_context>
chip_gen: v7x
topology: tpu7x:2x2x1
jax: 0.10.0
libtpu: 0.0.40
codegen_flags: <defaults>
</compile_context>

<pallas_src>
import functools

import jax
import jax.numpy as jnp
from jax.experimental import pallas as pl
from jax.experimental.pallas import tpu as pltpu


# ----------------------------------------------------------------------------
# Prologue kernel: XW_stack[r*N:(r+1)*N, :] = X @ W[r]   (stored bf16)
# ----------------------------------------------------------------------------
def _xw_kernel(x_ref, w_ref, xw_ref):
    xw_ref[...] = jnp.dot(
        x_ref[...], w_ref[0],
        preferred_element_type=jnp.float32).astype(xw_ref.dtype)


# ----------------------------------------------------------------------------
# Main fused kernel: out = relu(A @ XW_stack + X_rows @ W_root + b)
#   grid = (row tiles [parallel], K tiles over R*N [arbitrary])
# ----------------------------------------------------------------------------
def _rgcn_kernel(a_ref, xw_ref, x_row_ref, root_ref, bias_ref, out_ref,
                 acc_ref):
    k = pl.program_id(1)

    @pl.when(k == 0)
    def _():
        # Fold the root (self) connection and the bias into the accumulator
        # init; avoids a separate epilogue add pass.
        acc_ref[...] = (
            jnp.dot(x_row_ref[...], root_ref[...],
                    preferred_element_type=jnp.float32)
            + bias_ref[...])

    # Fused sum-aggregation over all relations: bf16 x bf16 MXU matmul with
    # f32 accumulation (no upcast copy of the adjacency tile).
    acc_ref[...] += jnp.dot(a_ref[...], xw_ref[...],
                            preferred_element_type=jnp.float32)

    @pl.when(k == pl.num_programs(1) - 1)
    def _():
        out_ref[...] = jnp.maximum(acc_ref[...], 0.0).astype(out_ref.dtype)


def _pick_tile(total, preferred, align):
    """Largest multiple of `align` dividing `total`, <= preferred; else total."""
    t = min(preferred, total)
    t = (t // align) * align
    while t >= align:
        if total % t == 0:
            return t
        t -= align
    return total


def rgcn_forward(adj_flat, features, weight, root, bias, *, tm=None, tk=None):
    """adj_flat: [N, R*N] bf16, relation-major columns (col = r*N + j).
    features: [N, Din] f32, weight: [R, Din, Dout], root: [Din, Dout],
    bias: [Dout].  Returns relu(RGCN(features)) as [N, Dout] f32."""
    N, RN = adj_flat.shape
    R, Din, Dout = weight.shape
    assert RN == R * N

    # Lane-dense output / weight padding (Dout -> multiple of 128).
    dpad = pl.cdiv(Dout, 128) * 128
    w_p = jnp.pad(weight, ((0, 0), (0, 0), (0, dpad - Dout)))
    root_p = jnp.pad(root, ((0, 0), (0, dpad - Dout)))
    bias_p = jnp.pad(bias, (0, dpad - Dout)).reshape(1, dpad)

    # ---- Prologue: per-relation transforms, computed once, stored bf16. ----
    xw_stack = pl.pallas_call(
        _xw_kernel,
        out_shape=jax.ShapeDtypeStruct((R * N, dpad), jnp.bfloat16),
        grid_spec=pltpu.PrefetchScalarGridSpec(
            num_scalar_prefetch=0,
            grid=(R,),
            in_specs=[
                pl.BlockSpec((N, Din), lambda r: (0, 0)),       # X (resident)
                pl.BlockSpec((1, Din, dpad), lambda r: (r, 0, 0)),  # W[r]
            ],
            out_specs=pl.BlockSpec((N, dpad), lambda r: (r, 0)),
        ),
        compiler_params=pltpu.CompilerParams(
            dimension_semantics=("parallel",)),
    )(features, w_p)

    # ---- Tile selection (fits v7x 64 MiB VMEM; tm >= 16 for bf16 packing). --
    if tm is None:
        tm = _pick_tile(N, 256, 16)
    if tk is None:
        tk = _pick_tile(RN, 2048, 128)
    assert N % tm == 0 and RN % tk == 0

    # Working-set estimate (double-buffered streams + resident params + acc).
    vmem_est = (2 * tm * tk * 2          # A tiles (bf16)
                + 2 * tk * dpad * 2      # XW tiles (bf16)
                + 2 * tm * Din * 4       # x_row tiles
                + Din * dpad * 4 + dpad * 4
                + tm * dpad * 4          # accumulator scratch
                + 2 * tm * dpad * 4)     # output tiles
    vmem_limit = int(min(max(2 * vmem_est, 32 << 20), 56 << 20))

    # ---- Main fused aggregation + root + bias + ReLU. ----------------------
    out_pad = pl.pallas_call(
        _rgcn_kernel,
        out_shape=jax.ShapeDtypeStruct((N, dpad), jnp.float32),
        grid_spec=pltpu.PrefetchScalarGridSpec(
            num_scalar_prefetch=0,
            grid=(N // tm, RN // tk),
            in_specs=[
                pl.BlockSpec((tm, tk), lambda i, k: (i, k)),      # A (bf16)
                pl.BlockSpec((tk, dpad), lambda i, k: (k, 0)),    # XW (bf16)
                pl.BlockSpec((tm, Din), lambda i, k: (i, 0)),     # X rows (root)
                pl.BlockSpec((Din, dpad), lambda i, k: (0, 0)),   # W_root
                pl.BlockSpec((1, dpad), lambda i, k: (0, 0)),     # bias
            ],
            out_specs=pl.BlockSpec((tm, dpad), lambda i, k: (i, 0)),
            scratch_shapes=[pltpu.VMEM((tm, dpad), jnp.float32)],
        ),
        compiler_params=pltpu.CompilerParams(
            dimension_semantics=("parallel", "arbitrary"),
            vmem_limit_bytes=vmem_limit),
    )(adj_flat, xw_stack, features, root_p, bias_p)

    return out_pad[:, :Dout]


def build_flat_adj(edge_index, edge_type, num_nodes, num_rels,
                   dtype=jnp.bfloat16):
    """edge_index: [2, E] (row 0 = src j, row 1 = dst i).  Returns [N, R*N]
    with entry [i, r*N + j] = multiplicity of edge j -> i of relation r.
    bf16 is exact for small integer edge counts and halves HBM traffic."""
    src, dst = edge_index[0], edge_index[1]
    adj = jnp.zeros((num_nodes, num_rels * num_nodes), jnp.float32)
    adj = adj.at[dst, edge_type * num_nodes + src].add(1.0)
    return adj.astype(dtype)


def rgcn_pyg_forward(edge_index, edge_type, features, weight, root, bias,
                     num_rels):
    """Mirrors RGCN_PyG.forward(adj=edge_index, features, edge_type)."""
    # TODO(synk): for large sparse graphs, replace the dense [N, R*N] adjacency
    # with a sorted-edge segment-sum kernel using scalar-prefetched offsets.
    N = features.shape[0]
    adj_flat = build_flat_adj(edge_index, edge_type, N, num_rels)
    return rgcn_forward(adj_flat, features, weight, root, bias)


if __name__ == "__main__":
    key = jax.random.PRNGKey(0)
    N, Din, Dout, R, E = 64, 16, 32, 4, 256

    k1, k2, k3, k4, k5, k6, k7 = jax.random.split(key, 7)

    # graph
    src = jax.random.randint(k1, (E,), 0, N)
    dst = jax.random.randint(k2, (E,), 0, N)
    edge_index = jnp.stack([src, dst], axis=0)          # [2, E]
    edge_type = jax.random.randint(k3, (E,), 0, R)      # [E]

    # node features
    features = jax.random.normal(k4, (N, Din), jnp.float32)

    # deterministic parameter init (FastRGCNConv shapes)
    weight = jax.random.normal(k5, (R, Din, Dout), jnp.float32) * 0.1
    root = jax.random.normal(k6, (Din, Dout), jnp.float32) * 0.1
    bias = jax.random.normal(k7, (Dout,), jnp.float32) * 0.1

    out = rgcn_pyg_forward(edge_index, edge_type, features, weight, root,
                           bias, R)
    out = jax.block_until_ready(out)

    # pure-JAX f32 reference (same dense formulation as FastRGCNConv + relu)
    adj_dense = jnp.zeros((R, N, N), jnp.float32)
    adj_dense = adj_dense.at[edge_type, dst, src].add(1.0)
    ref = jnp.einsum("rij,jd,rde->ie", adj_dense, features, weight)
    ref = ref + features @ root + bias[None, :]
    ref = jnp.maximum(ref, 0.0)

    assert out.shape == (N, Dout)
    # bf16 XW_stack / bf16 MXU passes introduce ~1e-3 drift vs the f32 ref.
    assert jnp.allclose(out, ref, atol=2e-2, rtol=2e-2)

    print("KERNEL_OK")
</pallas_src>

<mosaic_0001>
module attributes {stable_mosaic.version = 11 : i64} {
  func.func @_xw_kernel(%arg0: i32, %arg1: memref<64x16xf32, #tpu.memory_space<vmem>>, %arg2: memref<1x16x128xf32, #tpu.memory_space<vmem>>, %arg3: memref<64x128xbf16, #tpu.memory_space<vmem>>) attributes {dimension_semantics = [#tpu.dimension_semantics<parallel>], iteration_bounds = array<i64: 4>, scalar_prefetch = 0 : i64, scratch_operands = 0 : i64, tpu.core_type = #tpu.core_type<tc>, window_params = [{pipeline_mode = #tpu.pipeline_mode<synchronous>, transform_indices = @transform_0, window_bounds = array<i64: 64, 16>}, {transform_indices = @transform_1, window_bounds = array<i64: 1, 16, 128>}, {transform_indices = @transform_2, window_bounds = array<i64: 64, 128>}]} {
    %c0 = arith.constant 0 : index
    %c0_0 = arith.constant 0 : index
    %0 = vector.load %arg1[%c0, %c0_0] : memref<64x16xf32, #tpu.memory_space<vmem>>, vector<64x16xf32>
    %c0_1 = arith.constant 0 : index
    %c0_2 = arith.constant 0 : index
    %c0_3 = arith.constant 0 : index
    %1 = vector.load %arg2[%c0_1, %c0_2, %c0_3] : memref<1x16x128xf32, #tpu.memory_space<vmem>>, vector<1x16x128xf32>
    %2 = vector.shape_cast %1 : vector<1x16x128xf32> to vector<16x128xf32>
    %cst = arith.constant dense<0.000000e+00> : vector<64x128xf32>
    %3 = tpu.matmul %0, %2, %cst {dimension_numbers = #tpu.dot_dimension_numbers<[1], [0], [0], [1], [0, 0, 1, 1], [], []>} : vector<64x16xf32>, vector<16x128xf32>, vector<64x128xf32> -> vector<64x128xf32>
    %4 = arith.truncf %3 : vector<64x128xf32> to vector<64x128xbf16>
    %c0_4 = arith.constant 0 : index
    %c0_5 = arith.constant 0 : index
    %5 = vector.load %arg3[%c0_4, %c0_5] : memref<64x128xbf16, #tpu.memory_space<vmem>>, vector<64x128xbf16>
    tpu.vector_store %arg3[%c0_4, %c0_5], %4 {strides = array<i32>} : memref<64x128xbf16, #tpu.memory_space<vmem>>, vector<64x128xbf16>,
    return
  }
  func.func @transform_0(%arg0: i32) -> (i32, i32) {
    %c0_i32 = arith.constant 0 : i32
    %c0_i32_0 = arith.constant 0 : i32
    %c0_i32_1 = arith.constant 0 : i32
    return %c0_i32, %c0_i32_0 : i32, i32
  }
  func.func @transform_1(%arg0: i32) -> (i32, i32, i32) {
    %c0_i32 = arith.constant 0 : i32
    %c0_i32_0 = arith.constant 0 : i32
    %c0_i32_1 = arith.constant 0 : i32
    return %arg0, %c0_i32, %c0_i32_0 : i32, i32, i32
  }
  func.func @transform_2(%arg0: i32) -> (i32, i32) {
    %c0_i32 = arith.constant 0 : i32
    %c0_i32_0 = arith.constant 0 : i32
    return %arg0, %c0_i32 : i32, i32
  }
}

</mosaic_0001>

<llo_original>
// kernel: tpu_custom_call.1
$region0: #{tpu_custom_call.1}
  #allocation0 [shape = 'u32[]', space=smem, size = 0x4, offset = 0x4, fixed_abs, tag = 'smem constant byte address 0x4 - core index']
  #allocation1 [shape = 'u32[144,128]{1,0:T(1,128)}', space=vmem, size = 0x12000, scoped, tag = 'internal scratch']
  %s0 = inlined_call_operand.vmem [shape: f32[64,16], index: 0, kind: input, shape index: {}]
  %s1 = inlined_call_operand.vmem [shape: f32[4,16,128], index: 1, kind: input, shape index: {}]
  %s2 = inlined_call_operand.hbm [shape: bf16[256,128], index: 2, kind: output, shape index: {}]
  %s3 = sld [smem:[#allocation0]]
  $region41: #{tpu_custom_call.1} parent=0
    _
  %s5 = ssub.s32 1, %s3
  %s6 = scalar_select 0, %s5, %s3
  $region1: #{tpu_custom_call.1} parent=0
    #allocation2 [shape = 'u8[32768]{0}', space=vmem, size = 0x8000, scoped, tag = 'output window, operand 0']
    #allocation3 [shape = 's32[2]{0}', space=sflag, size = 0x8, scoped, tag = 'scoped memory for tpu_custom_call.1']
    %7 = vsyncpa [#allocation3], 0
    %s8 = scalar_lea.sflag [#allocation3], 1
    %9 = vsyncpa %s8, 0
    loop: start=0, step=1, limit=6
    $region2: #{tpu_custom_call.1} parent=1 // loop_pre_header
      _
    $region3: #{tpu_custom_call.1} parent=1 // loop_header
      %s11 = sphi 0, %s15
      %p12 = scmp.ge.s32.totalorder %s11, 6
      %s19 = sphi 0, %s19
      %s21 = sphi 0, %s19
      %s22 = sphi 0, %s21
      %s36 = sphi 0, %s22
      %s42 = sphi 0, %s44
      %s45 = sphi 0, %s42
      %s46 = sphi 0, %s45
      %s62 = sphi 0, %s46
      %s68 = sphi 0, %s70
      %s71 = sphi 0, %s68
      %s72 = sphi 0, %s71
      %s88 = sphi 0, %s72
    $region4: #{tpu_custom_call.1} parent=1 // loop_header_branch
      %14 = sbr.rel (%p12) target = $region8
    $region5: #{tpu_custom_call.1} parent=1 // loop_body
      %s16 = ssub.s32 %s11, 1
      %s17 = ssub.s32 %s11, 2
      %s18 = sadd.s32 %s11, 1
      %s20 = sadd.s32 %s19, 1
      %p23 = scmp.eq.s32.totalorder %s11, 3
      %p24 = scmp.ne.s32.totalorder %s19, %s21
      %p25 = scmp.eq.s32.totalorder %s11, 0
      %p26 = por %p24, %p25
      %p27 = scmp.ne.s32.totalorder %s19, %s21
      %p28 = scmp.eq.s32.totalorder %s16, 3
      %p29 = por %p27, %p28
      %p30 = scmp.ne.s32.totalorder %s21, %s22
      %p31 = scmp.eq.s32.totalorder %s16, 0
      %p32 = por %p30, %p31
      %p33 = scmp.ne.s32.totalorder %s21, %s22
      %p34 = scmp.eq.s32.totalorder %s17, 3
      %p35 = por %p33, %p34
      %p37 = scmp.ne.s32.totalorder %s22, %s36
      %p38 = scmp.eq.s32.totalorder %s17, 0
      %p39 = por %p37, %p38
      %s40 = ssub.s32 %s11, %s18
      %p41 = scmp.eq.s32.totalorder %s40, 0
      %s43 = sadd.s32 %s42, 1
      %s44 = scalar_select %p41, %s42, %s43
      %p47 = pneg %p41
      %p48 = scmp.eq.s32.totalorder %s11, 3
      %p49 = por %p47, %p48
      %p50 = scmp.ne.s32.totalorder %s42, %s45
      %p51 = scmp.eq.s32.totalorder %s11, 0
      %p52 = por %p50, %p51
      %p53 = scmp.ne.s32.totalorder %s42, %s45
      %p54 = scmp.eq.s32.totalorder %s16, 3
      %p55 = por %p53, %p54
      %p56 = scmp.ne.s32.totalorder %s45, %s46
      %p57 = scmp.eq.s32.totalorder %s16, 0
      %p58 = por %p56, %p57
      %p59 = scmp.ne.s32.totalorder %s45, %s46
      %p60 = scmp.eq.s32.totalorder %s17, 3
      %p61 = por %p59, %p60
      %p63 = scmp.ne.s32.totalorder %s46, %s62
      %p64 = scmp.eq.s32.totalorder %s17, 0
      %p65 = por %p63, %p64
      %s66 = ssub.s32 %s11, %s18
      %p67 = scmp.eq.s32.totalorder %s66, 0
      %s69 = sadd.s32 %s68, 1
      %s70 = scalar_select %p67, %s68, %s69
      %p73 = pneg %p67
      %p74 = scmp.eq.s32.totalorder %s11, 3
      %p75 = por %p73, %p74
      %p76 = scmp.ne.s32.totalorder %s68, %s71
      %p77 = scmp.eq.s32.totalorder %s11, 0
      %p78 = por %p76, %p77
      %p79 = scmp.ne.s32.totalorder %s68, %s71
      %p80 = scmp.eq.s32.totalorder %s16, 3
      %p81 = por %p79, %p80
      %p82 = scmp.ne.s32.totalorder %s71, %s72
      %p83 = scmp.eq.s32.totalorder %s16, 0
      %p84 = por %p82, %p83
      %p85 = scmp.ne.s32.totalorder %s71, %s72
      %p86 = scmp.eq.s32.totalorder %s17, 3
      %p87 = por %p85, %p86
      %p89 = scmp.ne.s32.totalorder %s72, %s88
      %p90 = scmp.eq.s32.totalorder %s17, 0
      %p91 = por %p89, %p90
      %p92 = scmp.le.s32.totalorder 1, %s11
      %p93 = scmp.lt.s32.totalorder %s11, 5
      %p94 = pnand %p92, %p93
      %p95 = pneg %p94
      // Predicated region
      $region9: #{tpu_custom_call.1} parent=5 // pred_check
        _
      $region10: #{tpu_custom_call.1} parent=5 // pred_check_branch
        %97 = sbr.rel (%p94) target = $region12
      $region11: #{tpu_custom_call.1} parent=5 // pred_region
        %s98 = ssub.s32 %s11, 1
        // Predicated region
        $region13: #{tpu_custom_call.1} parent=11 // pred_check
          %p99 = pneg %p32
        $region14: #{tpu_custom_call.1} parent=11 // pred_check_branch
          %101 = sbr.rel (%p99) target = $region16
        $region15: #{tpu_custom_call.1} parent=11 // pred_region
          _
        $region16: #{tpu_custom_call.1} parent=11 // pred_fallthru
          _
      $region12: #{tpu_custom_call.1} parent=5 // pred_fallthru
        _
      %p102 = scmp.lt.s32.totalorder %s11, 4
      // Predicated region
      $region17: #{tpu_custom_call.1} parent=5 // pred_check
        %p103 = pneg %p102
      $region18: #{tpu_custom_call.1} parent=5 // pred_check_branch
        %105 = sbr.rel (%p103) target = $region20
      $region19: #{tpu_custom_call.1} parent=5 // pred_region
        // Predicated region
        $region21: #{tpu_custom_call.1} parent=19 // pred_check
          %p106 = pneg %p52
        $region22: #{tpu_custom_call.1} parent=19 // pred_check_branch
          %108 = sbr.rel (%p106) target = $region24
        $region23: #{tpu_custom_call.1} parent=19 // pred_region
          %p109 = scmp.lt.s32.totalorder %s11, 3
          %s110 = scalar_select %p109, %s11, 3
          %s111 = smul.addr %s110, 2
          %s112 = smul.addr %s111, 8
          %s113 = scalar_lea.vmem %s1, %s112
        $region24: #{tpu_custom_call.1} parent=19 // pred_fallthru
          _
      $region20: #{tpu_custom_call.1} parent=5 // pred_fallthru
        _
      %p114 = scmp.le.s32.totalorder 1, %s11
      %p115 = scmp.lt.s32.totalorder %s11, 5
      %p116 = pnand %p114, %p115
      %p117 = pneg %p116
      // Predicated region
      $region25: #{tpu_custom_call.1} parent=5 // pred_check
        _
      $region26: #{tpu_custom_call.1} parent=5 // pred_check_branch
        %119 = sbr.rel (%p116) target = $region28
      $region27: #{tpu_custom_call.1} parent=5 // pred_region
        %s120 = ssub.s32 %s11, 1
        %p121 = pneg %p32
        %p122 = pneg %p29
        %p123 = scmp.lt.s32.totalorder %s16, 3
        %s124 = scalar_select %p123, %s16, 3
        %s125 = smul.addr %s124, 2
        %s126 = smul.addr %s125, 8
        %s127 = scalar_lea.vmem %s1, %s126
        %p128 = pneg %p58
        %p129 = pneg %p55
        %p130 = pneg %p84
        %p131 = pneg %p81
        %s132 = sand.u32 %s71, 1
        %s133 = scalar_lea.sflag [#allocation3], %s132
        %s134 = sand.u32 %s71, 1
        %s135 = smul.addr %s134, 32
        %s136 = scalar_lea.vmem [#allocation2], %s135
        %p137 = scmp.lt.s32.totalorder %s16, 3
        %s138 = scalar_select %p137, %s16, 3
        %s139 = smul.addr %s138, 2
        %s140 = smul.addr %s139, 8
        %s141 = scalar_lea.vmem %s1, %s140
        %s142 = smul.u32 8, %s16
        %v143 = vld [vmem:[%s0] sm:$0xff]
        %v144 = vld [vmem:[%s0 + $0x8] sm:$0xff]
        %v145 = vld [vmem:[%s0 + $0x10] sm:$0xff]
        %v146 = vld [vmem:[%s0 + $0x18] sm:$0xff]
        %v147 = vld [vmem:[%s0 + $0x20] sm:$0xff]
        %v148 = vld [vmem:[%s0 + $0x28] sm:$0xff]
        %v149 = vld [vmem:[%s0 + $0x30] sm:$0xff]
        %v150 = vld [vmem:[%s0 + $0x38] sm:$0xff]
        %v151 = vld [vmem:[%s141] sm:$0xff]
        %v152 = vld [vmem:[%s141 + $0x8] sm:$0xff]
        %vm153 = vcmask 130048
        %v155 = vsel %vm153, %v143, 0
        %v158 = vsel %vm153, %v144, 0
        %v161 = vsel %vm153, %v145, 0
        %v164 = vsel %vm153, %v146, 0
        %v167 = vsel %vm153, %v147, 0
        %v170 = vsel %vm153, %v148, 0
        %v173 = vsel %vm153, %v149, 0
        %v176 = vsel %vm153, %v150, 0
        %178 = vmatprep.subr.mxu0 0.0
        %179 = vmatpush1.msra.mxu0 %v151
        %180 = vmatprep.subr.mxu0 0.0
        %181 = vmatpush1.msra.mxu0 %v152
        %182 = vmatprep.subr.mxu0 0.0
        %183 = vmatpush1.msra.mxu0 0.0
        %184 = vmatprep.subr.mxu0 0.0
        %185 = vmatpush1.msra.mxu0 0.0
        %186 = vmatprep.subr.mxu0 0.0
        %187 = vmatpush1.msra.mxu0 0.0
        %188 = vmatprep.subr.mxu0 0.0
        %189 = vmatpush1.msra.mxu0 0.0
        %190 = vmatprep.subr.mxu0 0.0
        %191 = vmatpush1.msra.mxu0 0.0
        %192 = vmatprep.subr.mxu0 0.0
        %193 = vmatpush1.msra.mxu0 0.0
        %194 = vmatprep.subr.mxu0 0.0
        %195 = vmatpush1.msra.mxu0 0.0
        %196 = vmatprep.subr.mxu0 0.0
        %197 = vmatpush1.msra.mxu0 0.0
        %198 = vmatprep.subr.mxu0 0.0
        %199 = vmatpush1.msra.mxu0 0.0
        %200 = vmatprep.subr.mxu0 0.0
        %201 = vmatpush1.msra.mxu0 0.0
        %202 = vmatprep.subr.mxu0 0.0
        %203 = vmatpush1.msra.mxu0 0.0
        %204 = vmatprep.subr.mxu0 0.0
        %205 = vmatpush1.msra.mxu0 0.0
        %206 = vmatprep.subr.mxu0 0.0
        %207 = vmatpush1.msra.mxu0 0.0
        %208 = vmatprep.subr.mxu0 0.0
        %209 = vmatpush1.msra.mxu0 0.0
        %210 = vmatprep.subr.mxu0 0.0
        %211 = vmatpush1.msra.mxu0 0.0
        %212 = vmatprep.subr.mxu0 0.0
        %213 = vmatpush1.msra.mxu0 0.0
        %214 = vmatprep.subr.mxu0 0.0
        %215 = vmatpush1.msra.mxu0 0.0
        %216 = vmatprep.subr.mxu0 0.0
        %217 = vmatpush1.msra.mxu0 0.0
        %218 = vmatprep.subr.mxu0 0.0
        %219 = vmatpush1.msra.mxu0 0.0
        %220 = vmatprep.subr.mxu0 0.0
        %221 = vmatpush1.msra.mxu0 0.0
        %222 = vmatprep.subr.mxu0 0.0
        %223 = vmatpush1.msra.mxu0 0.0
        %224 = vmatprep.subr.mxu0 0.0
        %225 = vmatpush1.msra.mxu0 0.0
        %226 = vmatprep.subr.mxu0 0.0
        %227 = vmatpush1.msra.mxu0 0.0
        %228 = vmatprep.subr.mxu0 0.0
        %229 = vmatpush1.msra.mxu0 0.0
        %230 = vmatprep.subr.mxu0 0.0
        %231 = vmatpush1.msra.mxu0 0.0
        %232 = vmatprep.subr.mxu0 0.0
        %233 = vmatpush1.msra.mxu0 0.0
        %234 = vmatprep.subr.mxu0 0.0
        %235 = vmatpush1.msra.mxu0 0.0
        %236 = vmatprep.subr.mxu0 0.0
        %237 = vmatpush1.msra.mxu0 0.0
        %238 = vmatprep.subr.mxu0 0.0
        %239 = vmatpush1.msra.mxu0 0.0
        %240 = vmatprep.subr.mxu0 0.0
        %241 = vmatpush1.msra.mxu0 0.0
        %242 = vmatprep.mubr.f32.mxu0 0.0
        %243 = vmatmul.mubr.f32.gmra.mrb[0].mxu0 %v155
        %v244 = vpop.f32.mrb[0].mxu0
        %v245 = vadd.f32 0.0, %v244
        %v246 = vpop.f32.mrb[0].mxu0
        %247 = vmatprep.mubr.f32.mxu0 0.0
        %248 = vmatmul.mubr.f32.gmra.mrb[0].mxu0 %v158
        %v249 = vpop.f32.mrb[0].mxu0
        %v250 = vadd.f32 0.0, %v249
        %v251 = vpop.f32.mrb[0].mxu0
        %252 = vmatprep.mubr.f32.mxu0 0.0
        %253 = vmatmul.mubr.f32.gmra.mrb[0].mxu0 %v161
        %v254 = vpop.f32.mrb[0].mxu0
        %v255 = vadd.f32 0.0, %v254
        %v256 = vpop.f32.mrb[0].mxu0
        %257 = vmatprep.mubr.f32.mxu0 0.0
        %258 = vmatmul.mubr.f32.gmra.mrb[0].mxu0 %v164
        %v259 = vpop.f32.mrb[0].mxu0
        %v260 = vadd.f32 0.0, %v259
        %v261 = vpop.f32.mrb[0].mxu0
        %262 = vmatprep.mubr.f32.mxu0 0.0
        %263 = vmatmul.mubr.f32.gmra.mrb[0].mxu0 %v167
        %v264 = vpop.f32.mrb[0].mxu0
        %v265 = vadd.f32 0.0, %v264
        %v266 = vpop.f32.mrb[0].mxu0
        %267 = vmatprep.mubr.f32.mxu0 0.0
        %268 = vmatmul.mubr.f32.gmra.mrb[0].mxu0 %v170
        %v269 = vpop.f32.mrb[0].mxu0
        %v270 = vadd.f32 0.0, %v269
        %v271 = vpop.f32.mrb[0].mxu0
        %272 = vmatprep.mubr.f32.mxu0 0.0
        %273 = vmatmul.mubr.f32.gmra.mrb[0].mxu0 %v173
        %v274 = vpop.f32.mrb[0].mxu0
        %v275 = vadd.f32 0.0, %v274
        %v276 = vpop.f32.mrb[0].mxu0
        %277 = vmatprep.mubr.f32.mxu0 0.0
        %278 = vmatmul.mubr.f32.gmra.mrb[0].mxu0 %v176
        %v279 = vpop.f32.mrb[0].mxu0
        %v280 = vadd.f32 0.0, %v279
        %v281 = vpop.f32.mrb[0].mxu0
        %282 = vdwg.mxu0
        %v283 = vpack.c.bf16 %v250, %v245
        %v284 = vpack.c.bf16 %v260, %v255
        %v285 = vpack.c.bf16 %v270, %v265
        %v286 = vpack.c.bf16 %v280, %v275
        %v291 = vunpack.c.l.b16 %v283
        %v292 = vunpack.c.h.b16 %v283
        %v293 = vunpack.c.l.b16 %v284
        %v294 = vunpack.c.h.b16 %v284
        %v295 = vunpack.c.l.b16 %v285
        %v296 = vunpack.c.h.b16 %v285
        %v297 = vunpack.c.l.b16 %v286
        %v298 = vunpack.c.h.b16 %v286
        %v299 = vpack.c.b16 %v291, %v291
        %v300 = vpack.c.b16 %v292, %v292
        %v301 = vpack.c.b16 %v293, %v293
        %v302 = vpack.c.b16 %v294, %v294
        %v303 = vpack.c.b16 %v295, %v295
        %v304 = vpack.c.b16 %v296, %v296
        %v305 = vpack.c.b16 %v297, %v297
        %v306 = vpack.c.b16 %v298, %v298
        %315 = vst [vmem:[%s136] sm:$0xf] %v299
        %316 = vst [vmem:[%s136 + $0x4] sm:$0xf] %v300
        %317 = vst [vmem:[%s136 + $0x8] sm:$0xf] %v301
        %318 = vst [vmem:[%s136 + $0xc] sm:$0xf] %v302
        %319 = vst [vmem:[%s136 + $0x10] sm:$0xf] %v303
        %320 = vst [vmem:[%s136 + $0x14] sm:$0xf] %v304
        %321 = vst [vmem:[%s136 + $0x18] sm:$0xf] %v305
        %322 = vst [vmem:[%s136 + $0x1c] sm:$0xf] %v306
        %s323 = sand.u32 %s71, 1
        %s324 = scalar_lea.sflag [#allocation3], %s323
        %s325 = sand.u32 %s71, 1
        %s326 = smul.addr %s325, 32
        %s327 = scalar_lea.vmem [#allocation2], %s326
        // Predicated region
        $region29: #{tpu_custom_call.1} parent=27 // pred_check
          %p328 = pneg %p81
        $region30: #{tpu_custom_call.1} parent=27 // pred_check_branch
          %330 = sbr.rel (%p328) target = $region32
        $region31: #{tpu_custom_call.1} parent=27 // pred_region
          %s331 = smul.u32 8, %s16
          %s333 = ssub.s32 512, 512
          %334 = vsyncadd %s324, %s333
          %s335 = smul.addr %s331, 64
          %s336 = scalar_lea.hbm %s2, %s335
          %s337 = sshll.u32 %s327, 4
          %s338 = int_to_ptr.vmem [resolvable:$true] %s337
          %343 = dma.vmem_to_hbm [thread:$0]  %s338, 512, %s336, %s324, 64, 64, 4
        $region32: #{tpu_custom_call.1} parent=27 // pred_fallthru
          _
      $region28: #{tpu_custom_call.1} parent=5 // pred_fallthru
        _
      %p344 = scmp.le.s32.totalorder 2, %s11
      // Predicated region
      $region33: #{tpu_custom_call.1} parent=5 // pred_check
        %p345 = pneg %p344
      $region34: #{tpu_custom_call.1} parent=5 // pred_check_branch
        %347 = sbr.rel (%p345) target = $region36
      $region35: #{tpu_custom_call.1} parent=5 // pred_region
        %s348 = ssub.s32 %s11, 2
        // Predicated region
        $region37: #{tpu_custom_call.1} parent=35 // pred_check
          %p349 = pneg %p87
        $region38: #{tpu_custom_call.1} parent=35 // pred_check_branch
          %351 = sbr.rel (%p349) target = $region40
        $region39: #{tpu_custom_call.1} parent=35 // pred_region
          %s352 = sand.u32 %s72, 1
          %s353 = scalar_lea.sflag [#allocation3], %s352
          %s354 = sand.u32 %s72, 1
          %s355 = smul.addr %s354, 32
          %s356 = scalar_lea.vmem [#allocation2], %s355
          %357 = dma.done %s353, 512
        $region40: #{tpu_custom_call.1} parent=35 // pred_fallthru
          _
      $region36: #{tpu_custom_call.1} parent=5 // pred_fallthru
        _
    $region6: #{tpu_custom_call.1} parent=1 // loop_footer
      %s15 = sadd.s32 1, %s11
    $region7: #{tpu_custom_call.1} parent=1 // loop_footer_branch
      %10 = sbr.rel target = $region3
    $region8: #{tpu_custom_call.1} parent=1 // loop_exit
      _
    %358 = vsyncpa [#allocation3], 1
    %s359 = scalar_lea.sflag [#allocation3], 1
    %360 = vsyncpa %s359, 1

</llo_original>
